<compile_context>
chip_gen: v7x
topology: tpu7x:2x2x1
jax: 0.10.0
libtpu: 0.0.40
codegen_flags: <defaults>
</compile_context>

<pallas_src>
import functools

import jax
import jax.numpy as jnp
from jax.experimental import pallas as pl
from jax.experimental.pallas import tpu as pltpu


def _focal_dice_kernel(x_ref, t_ref, num_out, wsum_out, tgt_out,
                       num_acc, wsum_acc, tgt_acc, *, gamma):
    j = pl.program_id(1)  # pixel-tile (reduction) axis

    @pl.when(j == 0)
    def _():
        num_acc[...] = jnp.zeros_like(num_acc)
        wsum_acc[...] = jnp.zeros_like(wsum_acc)
        tgt_acc[...] = jnp.zeros_like(tgt_acc)

    x = x_ref[...].astype(jnp.float32)                      # (C, R, 128)

    # Softmax over the class axis (axis 0): C-1 elementwise VPU max/adds over
    # full (R, 128) vregs, one EUP exp, one reciprocal (instead of C divides).
    m = jnp.max(x, axis=0, keepdims=True)                   # (1, R, 128)
    e = jnp.exp(x - m)                                      # (C, R, 128)
    s = jnp.sum(e, axis=0, keepdims=True)                   # (1, R, 128)
    p = e * pl.reciprocal(s, approx=False)                  # (C, R, 128)

    # One-hot built on the fly: t1h[c, r, l] = (target[r, l] == c).
    cls = jax.lax.broadcasted_iota(jnp.int32, x.shape, 0)   # (C, R, 128)
    t1h = (cls == t_ref[...][None, :, :]).astype(jnp.float32)

    # Focal weight (1 - p)^gamma * p, specialized for small integer gamma so
    # no exp/log pair lands on the single EUP slot.
    if float(gamma).is_integer() and 0 <= int(gamma) <= 8:
        w = p
        one_m_p = 1.0 - p
        for _ in range(int(gamma)):
            w = w * one_m_p
    else:
        w = jnp.power(1.0 - p, float(gamma)) * p

    # Pure VPU accumulation into full-shape scratch; no per-step reductions.
    num_acc[...] += w * t1h
    wsum_acc[...] += w
    tgt_acc[...] += t1h

    # Single reduce per batch item, done once at the last pixel tile.
    @pl.when(j == pl.num_programs(1) - 1)
    def _():
        num_out[...] = jnp.sum(num_acc[...], axis=1)        # (C, 128)
        wsum_out[...] = jnp.sum(wsum_acc[...], axis=1)      # (C, 128)
        tgt_out[...] = jnp.sum(tgt_acc[...], axis=1)        # (C, 128)


def focal_dice_loss(logits_nchw, target_nhw, *, n_class, weight=None,
                    smooth=1.0, gamma=1, reduction='mean', tile_pixels=8192):
    """Pallas implementation of FocalDiceLoss.forward."""
    N, C, H, W = logits_nchw.shape
    assert C == n_class
    HW = H * W
    # TODO(synk): pixels not a multiple of 128 would require in-kernel masking
    # of the padded lanes (they would otherwise pollute the w-sum denominator).
    assert HW % 128 == 0, "H*W must be a multiple of 128"
    rows_total = HW // 128

    # Pick a tile of sublane-rows: either the whole pixel range, or the largest
    # multiple of 8 that divides rows_total and fits the requested tile size.
    max_rows = max(1, tile_pixels // 128)
    if rows_total <= max_rows:
        tile_rows = rows_total
    else:
        tile_rows = rows_total  # fallback: full-extent block (always legal)
        for cand in range(max_rows - (max_rows % 8), 7, -8):
            if rows_total % cand == 0:
                tile_rows = cand
                break

    # Free reshapes only — no HBM transpose pass, native logits dtype streamed.
    x = logits_nchw.reshape(N, C, rows_total, 128)
    t = target_nhw.reshape(N, rows_total, 128).astype(jnp.int32)

    kernel = functools.partial(_focal_dice_kernel, gamma=gamma)

    num_p, wsum_p, tgt_p = pl.pallas_call(
        kernel,
        out_shape=(
            jax.ShapeDtypeStruct((N, C, 128), jnp.float32),
            jax.ShapeDtypeStruct((N, C, 128), jnp.float32),
            jax.ShapeDtypeStruct((N, C, 128), jnp.float32),
        ),
        grid_spec=pltpu.PrefetchScalarGridSpec(
            num_scalar_prefetch=0,
            grid=(N, rows_total // tile_rows),
            in_specs=[
                pl.BlockSpec((None, C, tile_rows, 128),
                             lambda n, j: (n, 0, j, 0)),
                pl.BlockSpec((None, tile_rows, 128),
                             lambda n, j: (n, j, 0)),
            ],
            out_specs=[
                pl.BlockSpec((None, C, 128), lambda n, j: (n, 0, 0)),
                pl.BlockSpec((None, C, 128), lambda n, j: (n, 0, 0)),
                pl.BlockSpec((None, C, 128), lambda n, j: (n, 0, 0)),
            ],
            scratch_shapes=[
                pltpu.VMEM((C, tile_rows, 128), jnp.float32),
                pltpu.VMEM((C, tile_rows, 128), jnp.float32),
                pltpu.VMEM((C, tile_rows, 128), jnp.float32),
            ],
        ),
        compiler_params=pltpu.CompilerParams(
            dimension_semantics=("parallel", "arbitrary")),
    )(x, t)

    # Tiny epilogue in plain JAX: cross-lane + cross-batch reduce, dice, mean.
    num = jnp.sum(num_p, axis=(0, 2))                        # (C,)
    den = jnp.sum(wsum_p, axis=(0, 2)) + jnp.sum(tgt_p, axis=(0, 2))
    dice = (2.0 * num + smooth) / (den + smooth)
    if weight is not None:
        cw = jnp.asarray(weight, jnp.float32)
        cw = cw / jnp.sum(cw)
        dice = cw * dice
    loss = 1.0 - dice
    if reduction == 'mean':
        return jnp.mean(loss)
    elif reduction == 'sum':
        return jnp.sum(loss)
    elif reduction == 'none':
        return loss
    else:
        raise NotImplementedError


def _reference(logits_nchw, target_nhw, n_class, smooth=1.0, gamma=1):
    """Pure-JAX reference matching the PyTorch forward (weight=None, mean)."""
    p = jax.nn.softmax(logits_nchw.astype(jnp.float32), axis=1)        # (N,C,H,W)
    p = jnp.transpose(p, (1, 0, 2, 3)).reshape(n_class, -1)            # (C,P)
    t = jax.nn.one_hot(target_nhw, n_class, dtype=jnp.float32)         # (N,H,W,C)
    t = jnp.transpose(t, (3, 0, 1, 2)).reshape(n_class, -1)            # (C,P)
    w = jnp.power(1.0 - p, gamma) * p
    num = jnp.sum(w * t, axis=1)
    den = jnp.sum(w, axis=1) + jnp.sum(t, axis=1)
    dice = (2.0 * num + smooth) / (den + smooth)
    return jnp.mean(1.0 - dice)


if __name__ == "__main__":
    # FocalDiceLoss(n_class=4) with weight=None, smooth=1.0, gamma=1, 'mean'
    N, C, H, W = 2, 4, 16, 16
    key = jax.random.PRNGKey(0)
    k1, k2 = jax.random.split(key)
    logits = jax.random.normal(k1, (N, C, H, W), dtype=jnp.float32)
    target = jax.random.randint(k2, (N, H, W), 0, C, dtype=jnp.int32)

    loss = focal_dice_loss(logits, target, n_class=C, smooth=1.0, gamma=1)
    loss = jax.block_until_ready(loss)

    ref = jax.block_until_ready(_reference(logits, target, C, smooth=1.0, gamma=1))
    assert abs(float(loss) - float(ref)) < 1e-4, (float(loss), float(ref))

    print("KERNEL_OK")
</pallas_src>

<mosaic_0001>
module attributes {stable_mosaic.version = 11 : i64} {
  func.func @_focal_dice_kernel(%arg0: i32, %arg1: i32, %arg2: memref<1x4x2x128xf32, #tpu.memory_space<vmem>>, %arg3: memref<1x2x128xi32, #tpu.memory_space<vmem>>, %arg4: memref<1x4x128xf32, #tpu.memory_space<vmem>>, %arg5: memref<1x4x128xf32, #tpu.memory_space<vmem>>, %arg6: memref<1x4x128xf32, #tpu.memory_space<vmem>>, %arg7: memref<4x2x128xf32, #tpu.memory_space<vmem>>, %arg8: memref<4x2x128xf32, #tpu.memory_space<vmem>>, %arg9: memref<4x2x128xf32, #tpu.memory_space<vmem>>) attributes {dimension_semantics = [#tpu.dimension_semantics<parallel>, #tpu.dimension_semantics<arbitrary>], iteration_bounds = array<i64: 2, 1>, scalar_prefetch = 0 : i64, scratch_operands = 3 : i64, tpu.core_type = #tpu.core_type<tc>, window_params = [{transform_indices = @transform_0, window_bounds = array<i64: 1, 4, 2, 128>}, {transform_indices = @transform_1, window_bounds = array<i64: 1, 2, 128>}, {transform_indices = @transform_2, window_bounds = array<i64: 1, 4, 128>}, {transform_indices = @transform_3, window_bounds = array<i64: 1, 4, 128>}, {transform_indices = @transform_4, window_bounds = array<i64: 1, 4, 128>}]} {
    %c0_i32 = arith.constant 0 : i32
    %0 = arith.cmpi eq, %arg1, %c0_i32 : i32
    %1 = arith.extui %0 : i1 to i32
    %c0_i32_0 = arith.constant 0 : i32
    %2 = arith.cmpi ne, %1, %c0_i32_0 : i32
    scf.if %2 {
      %cst_29 = arith.constant 0.000000e+00 : f32
      %39 = vector.broadcast %cst_29 : f32 to vector<4x2x128xf32>
      %c0_30 = arith.constant 0 : index
      %c0_31 = arith.constant 0 : index
      %c0_32 = arith.constant 0 : index
      %40 = vector.load %arg7[%c0_30, %c0_31, %c0_32] : memref<4x2x128xf32, #tpu.memory_space<vmem>>, vector<4x2x128xf32>
      tpu.vector_store %arg7[%c0_30, %c0_31, %c0_32], %39 {strides = array<i32>} : memref<4x2x128xf32, #tpu.memory_space<vmem>>, vector<4x2x128xf32>,
      %cst_33 = arith.constant 0.000000e+00 : f32
      %41 = vector.broadcast %cst_33 : f32 to vector<4x2x128xf32>
      %c0_34 = arith.constant 0 : index
      %c0_35 = arith.constant 0 : index
      %c0_36 = arith.constant 0 : index
      %42 = vector.load %arg8[%c0_34, %c0_35, %c0_36] : memref<4x2x128xf32, #tpu.memory_space<vmem>>, vector<4x2x128xf32>
      tpu.vector_store %arg8[%c0_34, %c0_35, %c0_36], %41 {strides = array<i32>} : memref<4x2x128xf32, #tpu.memory_space<vmem>>, vector<4x2x128xf32>,
      %cst_37 = arith.constant 0.000000e+00 : f32
      %43 = vector.broadcast %cst_37 : f32 to vector<4x2x128xf32>
      %c0_38 = arith.constant 0 : index
      %c0_39 = arith.constant 0 : index
      %c0_40 = arith.constant 0 : index
      %44 = vector.load %arg9[%c0_38, %c0_39, %c0_40] : memref<4x2x128xf32, #tpu.memory_space<vmem>>, vector<4x2x128xf32>
      tpu.vector_store %arg9[%c0_38, %c0_39, %c0_40], %43 {strides = array<i32>} : memref<4x2x128xf32, #tpu.memory_space<vmem>>, vector<4x2x128xf32>,
    } else {
    }
    %c0 = arith.constant 0 : index
    %c0_1 = arith.constant 0 : index
    %c0_2 = arith.constant 0 : index
    %c0_3 = arith.constant 0 : index
    %3 = vector.load %arg2[%c0, %c0_1, %c0_2, %c0_3] : memref<1x4x2x128xf32, #tpu.memory_space<vmem>>, vector<1x4x2x128xf32>
    %4 = vector.shape_cast %3 : vector<1x4x2x128xf32> to vector<4x2x128xf32>
    %cst = arith.constant dense<0xFF800000> : vector<2x128xf32>
    %5 = vector.multi_reduction <maximumf>, %4, %cst [0] : vector<4x2x128xf32> to vector<2x128xf32>
    %6 = vector.shape_cast %5 : vector<2x128xf32> to vector<1x2x128xf32>
    %7 = vector.broadcast %6 : vector<1x2x128xf32> to vector<4x2x128xf32>
    %8 = arith.subf %4, %7 : vector<4x2x128xf32>
    %9 = math.exp %8 : vector<4x2x128xf32>
    %cst_4 = arith.constant dense<0.000000e+00> : vector<2x128xf32>
    %10 = vector.multi_reduction <add>, %9, %cst_4 [0] : vector<4x2x128xf32> to vector<2x128xf32>
    %11 = vector.shape_cast %10 : vector<2x128xf32> to vector<1x2x128xf32>
    %12 = tpu.reciprocal %11 : vector<1x2x128xf32> -> vector<1x2x128xf32>
    %13 = vector.broadcast %12 : vector<1x2x128xf32> to vector<4x2x128xf32>
    %14 = arith.mulf %9, %13 : vector<4x2x128xf32>
    %15 = tpu.iota {dimensions = array<i32: 0>} : vector<4x2x128xi32>
    %c0_5 = arith.constant 0 : index
    %c0_6 = arith.constant 0 : index
    %c0_7 = arith.constant 0 : index
    %16 = vector.load %arg3[%c0_5, %c0_6, %c0_7] : memref<1x2x128xi32, #tpu.memory_space<vmem>>, vector<1x2x128xi32>
    %17 = vector.shape_cast %16 : vector<1x2x128xi32> to vector<2x128xi32>
    %18 = vector.shape_cast %17 : vector<2x128xi32> to vector<1x2x128xi32>
    %19 = vector.broadcast %18 : vector<1x2x128xi32> to vector<4x2x128xi32>
    %20 = arith.cmpi eq, %15, %19 : vector<4x2x128xi32>
    %21 = arith.extui %20 : vector<4x2x128xi1> to vector<4x2x128xi32>
    %22 = arith.sitofp %21 : vector<4x2x128xi32> to vector<4x2x128xf32>
    %cst_8 = arith.constant 1.000000e+00 : f32
    %23 = vector.broadcast %cst_8 : f32 to vector<4x2x128xf32>
    %24 = arith.subf %23, %14 : vector<4x2x128xf32>
    %25 = arith.mulf %14, %24 : vector<4x2x128xf32>
    %c0_9 = arith.constant 0 : index
    %c0_10 = arith.constant 0 : index
    %c0_11 = arith.constant 0 : index
    %26 = vector.load %arg7[%c0_9, %c0_10, %c0_11] : memref<4x2x128xf32, #tpu.memory_space<vmem>>, vector<4x2x128xf32>
    %27 = arith.mulf %25, %22 : vector<4x2x128xf32>
    %28 = arith.addf %26, %27 : vector<4x2x128xf32>
    %c0_12 = arith.constant 0 : index
    %c0_13 = arith.constant 0 : index
    %c0_14 = arith.constant 0 : index
    %29 = vector.load %arg7[%c0_12, %c0_13, %c0_14] : memref<4x2x128xf32, #tpu.memory_space<vmem>>, vector<4x2x128xf32>
    tpu.vector_store %arg7[%c0_12, %c0_13, %c0_14], %28 {strides = array<i32>} : memref<4x2x128xf32, #tpu.memory_space<vmem>>, vector<4x2x128xf32>,
    %c0_15 = arith.constant 0 : index
    %c0_16 = arith.constant 0 : index
    %c0_17 = arith.constant 0 : index
    %30 = vector.load %arg8[%c0_15, %c0_16, %c0_17] : memref<4x2x128xf32, #tpu.memory_space<vmem>>, vector<4x2x128xf32>
    %31 = arith.addf %30, %25 : vector<4x2x128xf32>
    %c0_18 = arith.constant 0 : index
    %c0_19 = arith.constant 0 : index
    %c0_20 = arith.constant 0 : index
    %32 = vector.load %arg8[%c0_18, %c0_19, %c0_20] : memref<4x2x128xf32, #tpu.memory_space<vmem>>, vector<4x2x128xf32>
    tpu.vector_store %arg8[%c0_18, %c0_19, %c0_20], %31 {strides = array<i32>} : memref<4x2x128xf32, #tpu.memory_space<vmem>>, vector<4x2x128xf32>,
    %c0_21 = arith.constant 0 : index
    %c0_22 = arith.constant 0 : index
    %c0_23 = arith.constant 0 : index
    %33 = vector.load %arg9[%c0_21, %c0_22, %c0_23] : memref<4x2x128xf32, #tpu.memory_space<vmem>>, vector<4x2x128xf32>
    %34 = arith.addf %33, %22 : vector<4x2x128xf32>
    %c0_24 = arith.constant 0 : index
    %c0_25 = arith.constant 0 : index
    %c0_26 = arith.constant 0 : index
    %35 = vector.load %arg9[%c0_24, %c0_25, %c0_26] : memref<4x2x128xf32, #tpu.memory_space<vmem>>, vector<4x2x128xf32>
    tpu.vector_store %arg9[%c0_24, %c0_25, %c0_26], %34 {strides = array<i32>} : memref<4x2x128xf32, #tpu.memory_space<vmem>>, vector<4x2x128xf32>,
    %c0_i32_27 = arith.constant 0 : i32
    %36 = arith.cmpi eq, %arg1, %c0_i32_27 : i32
    %37 = arith.extui %36 : i1 to i32
    %c0_i32_28 = arith.constant 0 : i32
    %38 = arith.cmpi ne, %37, %c0_i32_28 : i32
    scf.if %38 {
      %c0_29 = arith.constant 0 : index
      %c0_30 = arith.constant 0 : index
      %c0_31 = arith.constant 0 : index
      %39 = vector.load %arg7[%c0_29, %c0_30, %c0_31] : memref<4x2x128xf32, #tpu.memory_space<vmem>>, vector<4x2x128xf32>
      %cst_32 = arith.constant dense<0.000000e+00> : vector<4x128xf32>
      %40 = vector.multi_reduction <add>, %39, %cst_32 [1] : vector<4x2x128xf32> to vector<4x128xf32>
      %c0_33 = arith.constant 0 : index
      %c0_34 = arith.constant 0 : index
      %c0_35 = arith.constant 0 : index
      %41 = vector.load %arg4[%c0_33, %c0_34, %c0_35] : memref<1x4x128xf32, #tpu.memory_space<vmem>>, vector<1x4x128xf32>
      %42 = vector.shape_cast %41 : vector<1x4x128xf32> to vector<4x128xf32>
      %43 = vector.shape_cast %40 : vector<4x128xf32> to vector<1x4x128xf32>
      tpu.vector_store %arg4[%c0_33, %c0_34, %c0_35], %43 {strides = array<i32>} : memref<1x4x128xf32, #tpu.memory_space<vmem>>, vector<1x4x128xf32>,
      %c0_36 = arith.constant 0 : index
      %c0_37 = arith.constant 0 : index
      %c0_38 = arith.constant 0 : index
      %44 = vector.load %arg8[%c0_36, %c0_37, %c0_38] : memref<4x2x128xf32, #tpu.memory_space<vmem>>, vector<4x2x128xf32>
      %cst_39 = arith.constant dense<0.000000e+00> : vector<4x128xf32>
      %45 = vector.multi_reduction <add>, %44, %cst_39 [1] : vector<4x2x128xf32> to vector<4x128xf32>
      %c0_40 = arith.constant 0 : index
      %c0_41 = arith.constant 0 : index
      %c0_42 = arith.constant 0 : index
      %46 = vector.load %arg5[%c0_40, %c0_41, %c0_42] : memref<1x4x128xf32, #tpu.memory_space<vmem>>, vector<1x4x128xf32>
      %47 = vector.shape_cast %46 : vector<1x4x128xf32> to vector<4x128xf32>
      %48 = vector.shape_cast %45 : vector<4x128xf32> to vector<1x4x128xf32>
      tpu.vector_store %arg5[%c0_40, %c0_41, %c0_42], %48 {strides = array<i32>} : memref<1x4x128xf32, #tpu.memory_space<vmem>>, vector<1x4x128xf32>,
      %c0_43 = arith.constant 0 : index
      %c0_44 = arith.constant 0 : index
      %c0_45 = arith.constant 0 : index
      %49 = vector.load %arg9[%c0_43, %c0_44, %c0_45] : memref<4x2x128xf32, #tpu.memory_space<vmem>>, vector<4x2x128xf32>
      %cst_46 = arith.constant dense<0.000000e+00> : vector<4x128xf32>
      %50 = vector.multi_reduction <add>, %49, %cst_46 [1] : vector<4x2x128xf32> to vector<4x128xf32>
      %c0_47 = arith.constant 0 : index
      %c0_48 = arith.constant 0 : index
      %c0_49 = arith.constant 0 : index
      %51 = vector.load %arg6[%c0_47, %c0_48, %c0_49] : memref<1x4x128xf32, #tpu.memory_space<vmem>>, vector<1x4x128xf32>
      %52 = vector.shape_cast %51 : vector<1x4x128xf32> to vector<4x128xf32>
      %53 = vector.shape_cast %50 : vector<4x128xf32> to vector<1x4x128xf32>
      tpu.vector_store %arg6[%c0_47, %c0_48, %c0_49], %53 {strides = array<i32>} : memref<1x4x128xf32, #tpu.memory_space<vmem>>, vector<1x4x128xf32>,
    } else {
    }
    return
  }
  func.func @transform_0(%arg0: i32, %arg1: i32) -> (i32, i32, i32, i32) {
    %c0_i32 = arith.constant 0 : i32
    %c0_i32_0 = arith.constant 0 : i32
    %c0_i32_1 = arith.constant 0 : i32
    return %arg0, %c0_i32, %arg1, %c0_i32_0 : i32, i32, i32, i32
  }
  func.func @transform_1(%arg0: i32, %arg1: i32) -> (i32, i32, i32) {
    %c0_i32 = arith.constant 0 : i32
    %c0_i32_0 = arith.constant 0 : i32
    return %arg0, %arg1, %c0_i32 : i32, i32, i32
  }
  func.func @transform_2(%arg0: i32, %arg1: i32) -> (i32, i32, i32) {
    %c0_i32 = arith.constant 0 : i32
    %c0_i32_0 = arith.constant 0 : i32
    %c0_i32_1 = arith.constant 0 : i32
    return %arg0, %c0_i32, %c0_i32_0 : i32, i32, i32
  }
  func.func @transform_3(%arg0: i32, %arg1: i32) -> (i32, i32, i32) {
    %c0_i32 = arith.constant 0 : i32
    %c0_i32_0 = arith.constant 0 : i32
    %c0_i32_1 = arith.constant 0 : i32
    return %arg0, %c0_i32, %c0_i32_0 : i32, i32, i32
  }
  func.func @transform_4(%arg0: i32, %arg1: i32) -> (i32, i32, i32) {
    %c0_i32 = arith.constant 0 : i32
    %c0_i32_0 = arith.constant 0 : i32
    %c0_i32_1 = arith.constant 0 : i32
    return %arg0, %c0_i32, %c0_i32_0 : i32, i32, i32
  }
}

</mosaic_0001>

<llo_original>
// kernel: tpu_custom_call.1
$region0: #{tpu_custom_call.1}
  #allocation0 [shape = 'u32[]', space=smem, size = 0x4, offset = 0x4, fixed_abs, tag = 'smem constant byte address 0x4 - core index']
  #allocation1 [shape = 'u32[144,128]{1,0:T(1,128)}', space=vmem, size = 0x12000, scoped, tag = 'internal scratch']
  #allocation2 [shape = 'f32[4,2,128]{2,1,0:T(2,128)}', space=vmem, size = 0x1000, scoped, tag = 'scratch operand']
  #allocation3 [shape = 'f32[4,2,128]{2,1,0:T(2,128)}', space=vmem, size = 0x1000, scoped, tag = 'scratch operand']
  #allocation4 [shape = 'f32[4,2,128]{2,1,0:T(2,128)}', space=vmem, size = 0x1000, scoped, tag = 'scratch operand']
  %s0 = inlined_call_operand.hbm [shape: f32[2,4,2,128], index: 0, kind: input, shape index: {}]
  %s1 = inlined_call_operand.hbm [shape: s32[2,2,128], index: 1, kind: input, shape index: {}]
  %s2 = inlined_call_operand.hbm [shape: f32[2,4,128], index: 2, kind: output, shape index: {0}]
  %s3 = inlined_call_operand.hbm [shape: f32[2,4,128], index: 3, kind: output, shape index: {1}]
  %s4 = inlined_call_operand.hbm [shape: f32[2,4,128], index: 4, kind: output, shape index: {2}]
  %5 = xla_tuple %s2, %s3, %s4
  %s6 = sld [smem:[#allocation0]]
  $region73: #{tpu_custom_call.1} parent=0
    _
  %s8 = ssub.s32 1, %s6
  %s9 = scalar_select 0, %s8, %s6
  $region1: #{tpu_custom_call.1} parent=0
    #allocation5 [shape = 'u8[8192]{0}', space=vmem, size = 0x2000, scoped, tag = 'input window, operand 0']
    #allocation6 [shape = 's32[2]{0}', space=sflag, size = 0x8, scoped, tag = 'scoped memory for tpu_custom_call.1']
    #allocation7 [shape = 's32[2]{0}', space=sflag, size = 0x8, scoped, tag = 'scoped memory for tpu_custom_call.1']
    #allocation8 [shape = 'u8[2048]{0}', space=vmem, size = 0x800, scoped, tag = 'input window, operand 1']
    #allocation9 [shape = 's32[2]{0}', space=sflag, size = 0x8, scoped, tag = 'scoped memory for tpu_custom_call.1']
    #allocation10 [shape = 'u8[4096]{0}', space=vmem, size = 0x1000, scoped, tag = 'output window, operand 0']
    #allocation11 [shape = 'u8[4096]{0}', space=vmem, size = 0x1000, scoped, tag = 'output window, operand 1']
    #allocation12 [shape = 's32[2]{0}', space=sflag, size = 0x8, scoped, tag = 'scoped memory for tpu_custom_call.1']
    #allocation13 [shape = 'u8[4096]{0}', space=vmem, size = 0x1000, scoped, tag = 'output window, operand 2']
    %10 = vsyncpa [#allocation6], 0
    %s11 = scalar_lea.sflag [#allocation6], 1
    %12 = vsyncpa %s11, 0
    %13 = vsyncpa [#allocation9], 0
    %s14 = scalar_lea.sflag [#allocation9], 1
    %15 = vsyncpa %s14, 0
    %16 = vsyncpa [#allocation7], 0
    %s17 = scalar_lea.sflag [#allocation7], 1
    %18 = vsyncpa %s17, 0
    %19 = vsyncpa [#allocation12], 0
    %s20 = scalar_lea.sflag [#allocation12], 1
    %21 = vsyncpa %s20, 0
    loop: start=0, step=1, limit=4
    $region2: #{tpu_custom_call.1} parent=1 // loop_pre_header
      _
    $region3: #{tpu_custom_call.1} parent=1 // loop_header
      %s23 = sphi 0, %s27
      %p24 = scmp.ge.s32.totalorder %s23, 4
      %s30 = sphi 0, %s42
      %s31 = sphi 0, %s38
      %s32 = sphi 0, %s30
      %s33 = sphi 0, %s31
      %s34 = sphi 0, %s32
      %s35 = sphi 0, %s33
      %s47 = sphi 0, %s49
      %s50 = sphi 0, %s47
      %s51 = sphi 0, %s50
      %s67 = sphi 0, %s51
      %s75 = sphi 0, %s77
      %s78 = sphi 0, %s75
      %s79 = sphi 0, %s78
      %s95 = sphi 0, %s79
      %s101 = sphi 0, %s103
      %s104 = sphi 0, %s101
      %s105 = sphi 0, %s104
      %s121 = sphi 0, %s105
      %s127 = sphi 0, %s129
      %s130 = sphi 0, %s127
      %s131 = sphi 0, %s130
      %s147 = sphi 0, %s131
      %s153 = sphi 0, %s155
      %s156 = sphi 0, %s153
      %s157 = sphi 0, %s156
      %s173 = sphi 0, %s157
    $region4: #{tpu_custom_call.1} parent=1 // loop_header_branch
      %26 = sbr.rel (%p24) target = $region8
    $region5: #{tpu_custom_call.1} parent=1 // loop_body
      %s28 = ssub.s32 %s23, 1
      %s29 = ssub.s32 %s23, 2
      %s36 = sadd.s32 1, %s31
      %p37 = scmp.ge.s32.totalorder %s36, 1
      %s38 = scalar_select %p37, 0, %s36
      %s39 = sadd.s32 1, %s30
      %s40 = scalar_select %p37, %s39, %s30
      %p41 = scmp.ge.s32.totalorder %s40, 2
      %s42 = scalar_select %p41, 0, %s40
      %s43 = ssub.s32 %s30, %s42
      %s44 = ssub.s32 %s31, %s38
      %s45 = sor.u32 %s43, %s44
      %p46 = scmp.eq.s32.totalorder %s45, 0
      %s48 = sadd.s32 %s47, 1
      %s49 = scalar_select %p46, %s47, %s48
      %p52 = pneg %p46
      %p53 = scmp.eq.s32.totalorder %s23, 1
      %p54 = por %p52, %p53
      %p55 = scmp.ne.s32.totalorder %s47, %s50
      %p56 = scmp.eq.s32.totalorder %s23, 0
      %p57 = por %p55, %p56
      %p58 = scmp.ne.s32.totalorder %s47, %s50
      %p59 = scmp.eq.s32.totalorder %s28, 1
      %p60 = por %p58, %p59
      %p61 = scmp.ne.s32.totalorder %s50, %s51
      %p62 = scmp.eq.s32.totalorder %s28, 0
      %p63 = por %p61, %p62
      %p64 = scmp.ne.s32.totalorder %s50, %s51
      %p65 = scmp.eq.s32.totalorder %s29, 1
      %p66 = por %p64, %p65
      %p68 = scmp.ne.s32.totalorder %s51, %s67
      %p69 = scmp.eq.s32.totalorder %s29, 0
      %p70 = por %p68, %p69
      %s71 = ssub.s32 %s30, %s42
      %s72 = ssub.s32 %s31, %s38
      %s73 = sor.u32 %s71, %s72
      %p74 = scmp.eq.s32.totalorder %s73, 0
      %s76 = sadd.s32 %s75, 1
      %s77 = scalar_select %p74, %s75, %s76
      %p80 = pneg %p74
      %p81 = scmp.eq.s32.totalorder %s23, 1
      %p82 = por %p80, %p81
      %p83 = scmp.ne.s32.totalorder %s75, %s78
      %p84 = scmp.eq.s32.totalorder %s23, 0
      %p85 = por %p83, %p84
      %p86 = scmp.ne.s32.totalorder %s75, %s78
      %p87 = scmp.eq.s32.totalorder %s28, 1
      %p88 = por %p86, %p87
      %p89 = scmp.ne.s32.totalorder %s78, %s79
      %p90 = scmp.eq.s32.totalorder %s28, 0
      %p91 = por %p89, %p90
      %p92 = scmp.ne.s32.totalorder %s78, %s79
      %p93 = scmp.eq.s32.totalorder %s29, 1
      %p94 = por %p92, %p93
      %p96 = scmp.ne.s32.totalorder %s79, %s95
      %p97 = scmp.eq.s32.totalorder %s29, 0
      %p98 = por %p96, %p97
      %s99 = ssub.s32 %s30, %s42
      %p100 = scmp.eq.s32.totalorder %s99, 0
      %s102 = sadd.s32 %s101, 1
      %s103 = scalar_select %p100, %s101, %s102
      %p106 = pneg %p100
      %p107 = scmp.eq.s32.totalorder %s23, 1
      %p108 = por %p106, %p107
      %p109 = scmp.ne.s32.totalorder %s101, %s104
      %p110 = scmp.eq.s32.totalorder %s23, 0
      %p111 = por %p109, %p110
      %p112 = scmp.ne.s32.totalorder %s101, %s104
      %p113 = scmp.eq.s32.totalorder %s28, 1
      %p114 = por %p112, %p113
      %p115 = scmp.ne.s32.totalorder %s104, %s105
      %p116 = scmp.eq.s32.totalorder %s28, 0
      %p117 = por %p115, %p116
      %p118 = scmp.ne.s32.totalorder %s104, %s105
      %p119 = scmp.eq.s32.totalorder %s29, 1
      %p120 = por %p118, %p119
      %p122 = scmp.ne.s32.totalorder %s105, %s121
      %p123 = scmp.eq.s32.totalorder %s29, 0
      %p124 = por %p122, %p123
      %s125 = ssub.s32 %s30, %s42
      %p126 = scmp.eq.s32.totalorder %s125, 0
      %s128 = sadd.s32 %s127, 1
      %s129 = scalar_select %p126, %s127, %s128
      %p132 = pneg %p126
      %p133 = scmp.eq.s32.totalorder %s23, 1
      %p134 = por %p132, %p133
      %p135 = scmp.ne.s32.totalorder %s127, %s130
      %p136 = scmp.eq.s32.totalorder %s23, 0
      %p137 = por %p135, %p136
      %p138 = scmp.ne.s32.totalorder %s127, %s130
      %p139 = scmp.eq.s32.totalorder %s28, 1
      %p140 = por %p138, %p139
      %p141 = scmp.ne.s32.totalorder %s130, %s131
      %p142 = scmp.eq.s32.totalorder %s28, 0
      %p143 = por %p141, %p142
      %p144 = scmp.ne.s32.totalorder %s130, %s131
      %p145 = scmp.eq.s32.totalorder %s29, 1
      %p146 = por %p144, %p145
      %p148 = scmp.ne.s32.totalorder %s131, %s147
      %p149 = scmp.eq.s32.totalorder %s29, 0
      %p150 = por %p148, %p149
      %s151 = ssub.s32 %s30, %s42
      %p152 = scmp.eq.s32.totalorder %s151, 0
      %s154 = sadd.s32 %s153, 1
      %s155 = scalar_select %p152, %s153, %s154
      %p158 = pneg %p152
      %p159 = scmp.eq.s32.totalorder %s23, 1
      %p160 = por %p158, %p159
      %p161 = scmp.ne.s32.totalorder %s153, %s156
      %p162 = scmp.eq.s32.totalorder %s23, 0
      %p163 = por %p161, %p162
      %p164 = scmp.ne.s32.totalorder %s153, %s156
      %p165 = scmp.eq.s32.totalorder %s28, 1
      %p166 = por %p164, %p165
      %p167 = scmp.ne.s32.totalorder %s156, %s157
      %p168 = scmp.eq.s32.totalorder %s28, 0
      %p169 = por %p167, %p168
      %p170 = scmp.ne.s32.totalorder %s156, %s157
      %p171 = scmp.eq.s32.totalorder %s29, 1
      %p172 = por %p170, %p171
      %p174 = scmp.ne.s32.totalorder %s157, %s173
      %p175 = scmp.eq.s32.totalorder %s29, 0
      %p176 = por %p174, %p175
      %p177 = scmp.le.s32.totalorder 1, %s23
      %p178 = scmp.lt.s32.totalorder %s23, 3
      %p179 = pnand %p177, %p178
      %p180 = pneg %p179
      // Predicated region
      $region9: #{tpu_custom_call.1} parent=5 // pred_check
        _
      $region10: #{tpu_custom_call.1} parent=5 // pred_check_branch
        %182 = sbr.rel (%p179) target = $region12
      $region11: #{tpu_custom_call.1} parent=5 // pred_region
        %s183 = ssub.s32 %s23, 1
      $region12: #{tpu_custom_call.1} parent=5 // pred_fallthru
        _
      %p184 = scmp.lt.s32.totalorder %s23, 2
      // Predicated region
      $region13: #{tpu_custom_call.1} parent=5 // pred_check
        %p185 = pneg %p184
      $region14: #{tpu_custom_call.1} parent=5 // pred_check_branch
        %187 = sbr.rel (%p185) target = $region16
      $region15: #{tpu_custom_call.1} parent=5 // pred_region
        // Predicated region
        $region17: #{tpu_custom_call.1} parent=15 // pred_check
          %p188 = pneg %p57
        $region18: #{tpu_custom_call.1} parent=15 // pred_check_branch
          %190 = sbr.rel (%p188) target = $region20
        $region19: #{tpu_custom_call.1} parent=15 // pred_region
          %s191 = sand.u32 %s47, 1
          %s192 = scalar_lea.sflag [#allocation6], %s191
          %s193 = sand.u32 %s47, 1
          %s194 = smul.addr %s193, 8
          %s195 = scalar_lea.vmem [#allocation5], %s194
          %s197 = ssub.s32 128, 128
          %198 = vsyncadd %s192, %s197
          %s199 = smul.addr %s30, 4
          %s200 = sadd.s32 %s31, %s199
          %s201 = smul.addr %s200, 32
          %s202 = scalar_lea.hbm %s0, %s201
          %s203 = sshll.u32 %s195, 4
          %s204 = int_to_ptr.vmem [resolvable:$true] %s203
          %209 = dma.hbm_to_vmem [thread:$0]  %s202, 128, %s204, %s192, 32, 32, 2
        $region20: #{tpu_custom_call.1} parent=15 // pred_fallthru
          _
        // Predicated region
        $region21: #{tpu_custom_call.1} parent=15 // pred_check
          %p210 = pneg %p85
        $region22: #{tpu_custom_call.1} parent=15 // pred_check_branch
          %212 = sbr.rel (%p210) target = $region24
        $region23: #{tpu_custom_call.1} parent=15 // pred_region
          %s213 = sand.u32 %s75, 1
          %s214 = scalar_lea.sflag [#allocation9], %s213
          %s215 = sand.u32 %s75, 1
          %s216 = smul.addr %s215, 2
          %s217 = scalar_lea.vmem [#allocation8], %s216
          %s219 = ssub.s32 32, 32
          %220 = vsyncadd %s214, %s219
          %s221 = sadd.s32 %s31, %s30
          %s222 = smul.addr %s221, 32
          %s223 = scalar_lea.hbm %s1, %s222
          %s225 = sshll.u32 %s217, 4
          %s226 = int_to_ptr.vmem [resolvable:$true] %s225
          %228 = dma.hbm_to_vmem [thread:$0]  %s223, 32, %s226, %s214
        $region24: #{tpu_custom_call.1} parent=15 // pred_fallthru
          _
      $region16: #{tpu_custom_call.1} parent=5 // pred_fallthru
        _
      %p229 = scmp.le.s32.totalorder 1, %s23
      %p230 = scmp.lt.s32.totalorder %s23, 3
      %p231 = pnand %p229, %p230
      %p232 = pneg %p231
      // Predicated region
      $region25: #{tpu_custom_call.1} parent=5 // pred_check
        _
      $region26: #{tpu_custom_call.1} parent=5 // pred_check_branch
        %234 = sbr.rel (%p231) target = $region28
      $region27: #{tpu_custom_call.1} parent=5 // pred_region
        %s235 = ssub.s32 %s23, 1
        %s236 = sand.u32 %s50, 1
        %s237 = scalar_lea.sflag [#allocation6], %s236
        %s238 = sand.u32 %s50, 1
        %s239 = smul.addr %s238, 8
        %s240 = scalar_lea.vmem [#allocation5], %s239
        // Predicated region
        $region29: #{tpu_custom_call.1} parent=27 // pred_check
          %p241 = pneg %p63
        $region30: #{tpu_custom_call.1} parent=27 // pred_check_branch
          %243 = sbr.rel (%p241) target = $region32
        $region31: #{tpu_custom_call.1} parent=27 // pred_region
          %244 = dma.done %s237, 128
        $region32: #{tpu_custom_call.1} parent=27 // pred_fallthru
          _
        %s245 = sand.u32 %s78, 1
        %s246 = scalar_lea.sflag [#allocation9], %s245
        %s247 = sand.u32 %s78, 1
        %s248 = smul.addr %s247, 2
        %s249 = scalar_lea.vmem [#allocation8], %s248
        // Predicated region
        $region33: #{tpu_custom_call.1} parent=27 // pred_check
          %p250 = pneg %p91
        $region34: #{tpu_custom_call.1} parent=27 // pred_check_branch
          %252 = sbr.rel (%p250) target = $region36
        $region35: #{tpu_custom_call.1} parent=27 // pred_region
          %253 = dma.done %s246, 32
        $region36: #{tpu_custom_call.1} parent=27 // pred_fallthru
          _
        %s254 = sand.u32 %s50, 1
        %s255 = scalar_lea.sflag [#allocation6], %s254
        %s256 = sand.u32 %s50, 1
        %s257 = smul.addr %s256, 8
        %s258 = scalar_lea.vmem [#allocation5], %s257
        %p259 = pneg %p63
        %p260 = pneg %p60
        %s261 = sand.u32 %s78, 1
        %s262 = scalar_lea.sflag [#allocation9], %s261
        %s263 = sand.u32 %s78, 1
        %s264 = smul.addr %s263, 2
        %s265 = scalar_lea.vmem [#allocation8], %s264
        %p266 = pneg %p91
        %p267 = pneg %p88
        %p268 = pneg %p117
        %p269 = pneg %p114
        %s270 = sand.u32 %s104, 1
        %s271 = scalar_lea.sflag [#allocation7], %s270
        %s272 = sand.u32 %s104, 1
        %s273 = smul.addr %s272, 4
        %s274 = scalar_lea.vmem [#allocation10], %s273
        %p275 = pneg %p143
        %p276 = pneg %p140
        %s277 = sand.u32 %s28, 1
        %s278 = scalar_lea.sflag [#allocation12], %s277
        %s279 = sand.u32 %s130, 1
        %s280 = smul.addr %s279, 4
        %s281 = scalar_lea.vmem [#allocation11], %s280
        %p282 = pneg %p169
        %p283 = pneg %p166
        %s284 = sand.u32 %s28, 1
        %s285 = scalar_lea.sflag [#allocation12], %s284
        %s286 = sand.u32 %s156, 1
        %s287 = smul.addr %s286, 4
        %s288 = scalar_lea.vmem [#allocation13], %s287
        %p289 = scmp.eq.s32.totalorder %s33, 0
        // Predicated region
        $region37: #{tpu_custom_call.1} parent=27 // pred_check
          %p290 = pneg %p289
        $region38: #{tpu_custom_call.1} parent=27 // pred_check_branch
          %292 = sbr.rel (%p290) target = $region40
        $region39: #{tpu_custom_call.1} parent=27 // pred_region
          %293 = vst [vmem:[#allocation2] sm:$0x3] 0.0
          %294 = vst [vmem:[#allocation2 + $0x2] sm:$0x3] 0.0
          %295 = vst [vmem:[#allocation2 + $0x4] sm:$0x3] 0.0
          %296 = vst [vmem:[#allocation2 + $0x6] sm:$0x3] 0.0
          %297 = vst [vmem:[#allocation3] sm:$0x3] 0.0
          %298 = vst [vmem:[#allocation3 + $0x2] sm:$0x3] 0.0
          %299 = vst [vmem:[#allocation3 + $0x4] sm:$0x3] 0.0
          %300 = vst [vmem:[#allocation3 + $0x6] sm:$0x3] 0.0
          %301 = vst [vmem:[#allocation4] sm:$0x3] 0.0
          %302 = vst [vmem:[#allocation4 + $0x2] sm:$0x3] 0.0
          %303 = vst [vmem:[#allocation4 + $0x4] sm:$0x3] 0.0
          %304 = vst [vmem:[#allocation4 + $0x6] sm:$0x3] 0.0
        $region40: #{tpu_custom_call.1} parent=27 // pred_fallthru
          _
        %v305 = vld [vmem:[%s240] sm:$0x3]
        %v306 = vld [vmem:[%s240 + $0x2] sm:$0x3]
        %v307 = vld [vmem:[%s240 + $0x4] sm:$0x3]
        %v308 = vld [vmem:[%s240 + $0x6] sm:$0x3]
        %vm309 = vcmask 1041408
        %v310 = vsel %vm309, %v305, -inf
        %v311 = vsel %vm309, %v306, -inf
        %v312 = vsel %vm309, %v307, -inf
        %v313 = vsel %vm309, %v308, -inf
        %v314 = vmax.f32 %v310, %v311
        %v315 = vmax.f32 %v312, %v313
        %v316 = vmax.f32 %v314, %v315
        %v317 = vsub.f32 %v305, %v316
        %v318 = vsub.f32 %v306, %v316
        %v319 = vsub.f32 %v307, %v316
        %v320 = vsub.f32 %v308, %v316
        %v321 = vmul.f32 %v317, 1.442695
        %v322 = vpow.pop %v321
        %v323 = vmul.f32 %v318, 1.442695
        %v324 = vpow.pop %v323
        %v325 = vmul.f32 %v319, 1.442695
        %v326 = vpow.pop %v325
        %v327 = vmul.f32 %v320, 1.442695
        %v328 = vpow.pop %v327
        %v329 = vsel %vm309, %v322, 0.0
        %v330 = vsel %vm309, %v324, 0.0
        %v331 = vadd.f32 %v329, %v330
        %v332 = vsel %vm309, %v326, 0.0
        %v333 = vadd.f32 %v331, %v332
        %v334 = vsel %vm309, %v328, 0.0
        %v335 = vadd.f32 %v333, %v334
        %v336 = vrcp.pop %v335
        %v337 = vmul.f32 %v322, %v336
        %v338 = vmul.f32 %v324, %v336
        %v339 = vmul.f32 %v326, %v336
        %v340 = vmul.f32 %v328, %v336
        %v341 = vld [vmem:[%s249] sm:$0x3]
        %vm342 = vcmp.eq.s32.totalorder %v341, 0
        %vm343 = vcmp.eq.s32.totalorder %v341, 1
        %vm344 = vcmp.eq.s32.totalorder %v341, 2
        %vm345 = vcmp.eq.s32.totalorder %v341, 3
        %v346 = vsel %vm342, 1, 0
        %v347 = vsel %vm343, 1, 0
        %v348 = vsel %vm344, 1, 0
        %v349 = vsel %vm345, 1, 0
        %v350 = vcvt.s32.f32 %v346
        %v351 = vcvt.s32.f32 %v347
        %v352 = vcvt.s32.f32 %v348
        %v353 = vcvt.s32.f32 %v349
        %v354 = vsub.f32 1.0, %v337
        %v355 = vsub.f32 1.0, %v338
        %v356 = vsub.f32 1.0, %v339
        %v357 = vsub.f32 1.0, %v340
        %v358 = vmul.f32 %v337, %v354
        %v359 = vmul.f32 %v338, %v355
        %v360 = vmul.f32 %v339, %v356
        %v361 = vmul.f32 %v340, %v357
        %v362 = vld [vmem:[#allocation2] sm:$0x3]
        %v363 = vld [vmem:[#allocation2 + $0x2] sm:$0x3]
        %v364 = vld [vmem:[#allocation2 + $0x4] sm:$0x3]
        %v365 = vld [vmem:[#allocation2 + $0x6] sm:$0x3]
        %v366 = vmul.f32 %v358, %v350
        %v367 = vmul.f32 %v359, %v351
        %v368 = vmul.f32 %v360, %v352
        %v369 = vmul.f32 %v361, %v353
        %v370 = vadd.f32 %v362, %v366
        %v371 = vadd.f32 %v363, %v367
        %v372 = vadd.f32 %v364, %v368
        %v373 = vadd.f32 %v365, %v369
        %374 = vst [vmem:[#allocation2] sm:$0x3] %v370
        %375 = vst [vmem:[#allocation2 + $0x2] sm:$0x3] %v371
        %376 = vst [vmem:[#allocation2 + $0x4] sm:$0x3] %v372
        %377 = vst [vmem:[#allocation2 + $0x6] sm:$0x3] %v373
        %v378 = vld [vmem:[#allocation3] sm:$0x3]
        %v379 = vld [vmem:[#allocation3 + $0x2] sm:$0x3]
        %v380 = vld [vmem:[#allocation3 + $0x4] sm:$0x3]
        %v381 = vld [vmem:[#allocation3 + $0x6] sm:$0x3]
        %v382 = vadd.f32 %v378, %v358
        %v383 = vadd.f32 %v379, %v359
        %v384 = vadd.f32 %v380, %v360
        %v385 = vadd.f32 %v381, %v361
        %386 = vst [vmem:[#allocation3] sm:$0x3] %v382
        %387 = vst [vmem:[#allocation3 + $0x2] sm:$0x3] %v383
        %388 = vst [vmem:[#allocation3 + $0x4] sm:$0x3] %v384
        %389 = vst [vmem:[#allocation3 + $0x6] sm:$0x3] %v385
        %v390 = vld [vmem:[#allocation4] sm:$0x3]
        %v391 = vld [vmem:[#allocation4 + $0x2] sm:$0x3]
        %v392 = vld [vmem:[#allocation4 + $0x4] sm:$0x3]
        %v393 = vld [vmem:[#allocation4 + $0x6] sm:$0x3]
        %v394 = vadd.f32 %v390, %v350
        %v395 = vadd.f32 %v391, %v351
        %v396 = vadd.f32 %v392, %v352
        %v397 = vadd.f32 %v393, %v353
        %398 = vst [vmem:[#allocation4] sm:$0x3] %v394
        %399 = vst [vmem:[#allocation4 + $0x2] sm:$0x3] %v395
        %400 = vst [vmem:[#allocation4 + $0x4] sm:$0x3] %v396
        %401 = vst [vmem:[#allocation4 + $0x6] sm:$0x3] %v397
        // Predicated region
        $region41: #{tpu_custom_call.1} parent=27 // pred_check
          %p402 = pneg %p289
        $region42: #{tpu_custom_call.1} parent=27 // pred_check_branch
          %404 = sbr.rel (%p402) target = $region44
        $region43: #{tpu_custom_call.1} parent=27 // pred_region
          %v405 = vld [vmem:[#allocation2] sm:$0x3]
          %v406 = vld [vmem:[#allocation2 + $0x2] sm:$0x3]
          %v407 = vld [vmem:[#allocation2 + $0x4] sm:$0x3]
          %v408 = vld [vmem:[#allocation2 + $0x6] sm:$0x3]
          %v409 = vsel %vm309, %v405, 0.0
          %v410 = vrot.slane %v409, 4
          %v411 = vadd.f32 %v409, %v410
          %v412 = vrot.slane %v411, 2
          %v413 = vadd.f32 %v411, %v412
          %v414 = vrot.slane %v413, 1
          %v415 = vadd.f32 %v413, %v414
          %v416 = vsel %vm309, %v406, 0.0
          %v417 = vrot.slane %v416, 4
          %v418 = vadd.f32 %v416, %v417
          %v419 = vrot.slane %v418, 2
          %v420 = vadd.f32 %v418, %v419
          %v421 = vrot.slane %v420, 1
          %v422 = vadd.f32 %v420, %v421
          %v423 = vsel %vm309, %v407, 0.0
          %v424 = vrot.slane %v423, 4
          %v425 = vadd.f32 %v423, %v424
          %v426 = vrot.slane %v425, 2
          %v427 = vadd.f32 %v425, %v426
          %v428 = vrot.slane %v427, 1
          %v429 = vadd.f32 %v427, %v428
          %v430 = vsel %vm309, %v408, 0.0
          %v431 = vrot.slane %v430, 4
          %v432 = vadd.f32 %v430, %v431
          %v433 = vrot.slane %v432, 2
          %v434 = vadd.f32 %v432, %v433
          %v435 = vrot.slane %v434, 1
          %v436 = vadd.f32 %v434, %v435
          %vm441 = vcmask 1041409
          %v442 = vsel %vm441, %v422, %v415
          %vm443 = vcmask 1042434
          %v444 = vsel %vm443, %v429, %v442
          %vm445 = vcmask 1043459
          %v446 = vsel %vm445, %v436, %v444
          %448 = vst [vmem:[%s274] sm:$0xf] %v446
          %v449 = vld [vmem:[#allocation3] sm:$0x3]
          %v450 = vld [vmem:[#allocation3 + $0x2] sm:$0x3]
          %v451 = vld [vmem:[#allocation3 + $0x4] sm:$0x3]
          %v452 = vld [vmem:[#allocation3 + $0x6] sm:$0x3]
          %v453 = vsel %vm309, %v449, 0.0
          %v454 = vrot.slane %v453, 4
          %v455 = vadd.f32 %v453, %v454
          %v456 = vrot.slane %v455, 2
          %v457 = vadd.f32 %v455, %v456
          %v458 = vrot.slane %v457, 1
          %v459 = vadd.f32 %v457, %v458
          %v460 = vsel %vm309, %v450, 0.0
          %v461 = vrot.slane %v460, 4
          %v462 = vadd.f32 %v460, %v461
          %v463 = vrot.slane %v462, 2
          %v464 = vadd.f32 %v462, %v463
          %v465 = vrot.slane %v464, 1
          %v466 = vadd.f32 %v464, %v465
          %v467 = vsel %vm309, %v451, 0.0
          %v468 = vrot.slane %v467, 4
          %v469 = vadd.f32 %v467, %v468
          %v470 = vrot.slane %v469, 2
          %v471 = vadd.f32 %v469, %v470
          %v472 = vrot.slane %v471, 1
          %v473 = vadd.f32 %v471, %v472
          %v474 = vsel %vm309, %v452, 0.0
          %v475 = vrot.slane %v474, 4
          %v476 = vadd.f32 %v474, %v475
          %v477 = vrot.slane %v476, 2
          %v478 = vadd.f32 %v476, %v477
          %v479 = vrot.slane %v478, 1
          %v480 = vadd.f32 %v478, %v479
          %v485 = vsel %vm441, %v466, %v459
          %v486 = vsel %vm443, %v473, %v485
          %v487 = vsel %vm445, %v480, %v486
          %489 = vst [vmem:[%s281] sm:$0xf] %v487
          %v490 = vld [vmem:[#allocation4] sm:$0x3]
          %v491 = vld [vmem:[#allocation4 + $0x2] sm:$0x3]
          %v492 = vld [vmem:[#allocation4 + $0x4] sm:$0x3]
          %v493 = vld [vmem:[#allocation4 + $0x6] sm:$0x3]
          %v494 = vsel %vm309, %v490, 0.0
          %v495 = vrot.slane %v494, 4
          %v496 = vadd.f32 %v494, %v495
          %v497 = vrot.slane %v496, 2
          %v498 = vadd.f32 %v496, %v497
          %v499 = vrot.slane %v498, 1
          %v500 = vadd.f32 %v498, %v499
          %v501 = vsel %vm309, %v491, 0.0
          %v502 = vrot.slane %v501, 4
          %v503 = vadd.f32 %v501, %v502
          %v504 = vrot.slane %v503, 2
          %v505 = vadd.f32 %v503, %v504
          %v506 = vrot.slane %v505, 1
          %v507 = vadd.f32 %v505, %v506
          %v508 = vsel %vm309, %v492, 0.0
          %v509 = vrot.slane %v508, 4
          %v510 = vadd.f32 %v508, %v509
          %v511 = vrot.slane %v510, 2
          %v512 = vadd.f32 %v510, %v511
          %v513 = vrot.slane %v512, 1
          %v514 = vadd.f32 %v512, %v513
          %v515 = vsel %vm309, %v493, 0.0
          %v516 = vrot.slane %v515, 4
          %v517 = vadd.f32 %v515, %v516
          %v518 = vrot.slane %v517, 2
          %v519 = vadd.f32 %v517, %v518
          %v520 = vrot.slane %v519, 1
          %v521 = vadd.f32 %v519, %v520
          %v526 = vsel %vm441, %v507, %v500
          %v527 = vsel %vm443, %v514, %v526
          %v528 = vsel %vm445, %v521, %v527
          %530 = vst [vmem:[%s288] sm:$0xf] %v528
        $region44: #{tpu_custom_call.1} parent=27 // pred_fallthru
          _
        %s531 = sand.u32 %s104, 1
        %s532 = scalar_lea.sflag [#allocation7], %s531
        %s533 = sand.u32 %s104, 1
        %s534 = smul.addr %s533, 4
        %s535 = scalar_lea.vmem [#allocation10], %s534
        %s536 = sand.u32 %s28, 1
        %s537 = scalar_lea.sflag [#allocation12], %s536
        %s538 = sand.u32 %s130, 1
        %s539 = smul.addr %s538, 4
        %s540 = scalar_lea.vmem [#allocation11], %s539
        %s541 = sand.u32 %s28, 1
        %s542 = scalar_lea.sflag [#allocation12], %s541
        %s543 = sand.u32 %s156, 1
        %s544 = smul.addr %s543, 4
        %s545 = scalar_lea.vmem [#allocation13], %s544
        // Predicated region
        $region45: #{tpu_custom_call.1} parent=27 // pred_check
          %p546 = pneg %p114
        $region46: #{tpu_custom_call.1} parent=27 // pred_check_branch
          %548 = sbr.rel (%p546) target = $region48
        $region47: #{tpu_custom_call.1} parent=27 // pred_region
          %s550 = ssub.s32 64, 64
          %551 = vsyncadd %s532, %s550
          %s552 = smul.addr %s32, 64
          %s553 = scalar_lea.hbm %s2, %s552
          %s555 = sshll.u32 %s535, 4
          %s556 = int_to_ptr.vmem [resolvable:$true] %s555
          %558 = dma.vmem_to_hbm [thread:$0]  %s556, 64, %s553, %s532
        $region48: #{tpu_custom_call.1} parent=27 // pred_fallthru
          _
        // Predicated region
        $region49: #{tpu_custom_call.1} parent=27 // pred_check
          %p559 = pneg %p140
        $region50: #{tpu_custom_call.1} parent=27 // pred_check_branch
          %561 = sbr.rel (%p559) target = $region52
        $region51: #{tpu_custom_call.1} parent=27 // pred_region
          %s563 = ssub.s32 64, 64
          %564 = vsyncadd %s537, %s563
          %s565 = smul.addr %s32, 64
          %s566 = scalar_lea.hbm %s3, %s565
          %s568 = sshll.u32 %s540, 4
          %s569 = int_to_ptr.vmem [resolvable:$true] %s568
          %571 = dma.vmem_to_hbm [thread:$0]  %s569, 64, %s566, %s537
        $region52: #{tpu_custom_call.1} parent=27 // pred_fallthru
          _
        // Predicated region
        $region53: #{tpu_custom_call.1} parent=27 // pred_check
          %p572 = pneg %p166
        $region54: #{tpu_custom_call.1} parent=27 // pred_check_branch
          %574 = sbr.rel (%p572) target = $region56
        $region55: #{tpu_custom_call.1} parent=27 // pred_region
          %s576 = ssub.s32 64, 64
          %577 = vsyncadd %s542, %s576
          %s578 = smul.addr %s32, 64
          %s579 = scalar_lea.hbm %s4, %s578
          %s581 = sshll.u32 %s545, 4
          %s582 = int_to_ptr.vmem [resolvable:$true] %s581
          %584 = dma.vmem_to_hbm [thread:$0]  %s582, 64, %s579, %s542
        $region56: #{tpu_custom_call.1} parent=27 // pred_fallthru
          _
      $region28: #{tpu_custom_call.1} parent=5 // pred_fallthru
        _
      %p585 = scmp.le.s32.totalorder 2, %s23
      // Predicated region
      $region57: #{tpu_custom_call.1} parent=5 // pred_check
        %p586 = pneg %p585
      $region58: #{tpu_custom_call.1} parent=5 // pred_check_branch
        %588 = sbr.rel (%p586) target = $region60
      $region59: #{tpu_custom_call.1} parent=5 // pred_region
        %s589 = ssub.s32 %s23, 2
        // Predicated region
        $region61: #{tpu_custom_call.1} parent=59 // pred_check
          %p590 = pneg %p120
        $region62: #{tpu_custom_call.1} parent=59 // pred_check_branch
          %592 = sbr.rel (%p590) target = $region64
        $region63: #{tpu_custom_call.1} parent=59 // pred_region
          %s593 = sand.u32 %s105, 1
          %s594 = scalar_lea.sflag [#allocation7], %s593
          %s595 = sand.u32 %s105, 1
          %s596 = smul.addr %s595, 4
          %s597 = scalar_lea.vmem [#allocation10], %s596
          %598 = dma.done %s594, 64
        $region64: #{tpu_custom_call.1} parent=59 // pred_fallthru
          _
        // Predicated region
        $region65: #{tpu_custom_call.1} parent=59 // pred_check
          %p599 = pneg %p146
        $region66: #{tpu_custom_call.1} parent=59 // pred_check_branch
          %601 = sbr.rel (%p599) target = $region68
        $region67: #{tpu_custom_call.1} parent=59 // pred_region
          %s602 = sand.u32 %s29, 1
          %s603 = scalar_lea.sflag [#allocation12], %s602
          %s604 = sand.u32 %s131, 1
          %s605 = smul.addr %s604, 4
          %s606 = scalar_lea.vmem [#allocation11], %s605
          %607 = dma.done %s603, 64
        $region68: #{tpu_custom_call.1} parent=59 // pred_fallthru
          _
        // Predicated region
        $region69: #{tpu_custom_call.1} parent=59 // pred_check
          %p608 = pneg %p172
        $region70: #{tpu_custom_call.1} parent=59 // pred_check_branch
          %610 = sbr.rel (%p608) target = $region72
        $region71: #{tpu_custom_call.1} parent=59 // pred_region
          %s611 = sand.u32 %s29, 1
          %s612 = scalar_lea.sflag [#allocation12], %s611
          %s613 = sand.u32 %s157, 1
          %s614 = smul.addr %s613, 4
          %s615 = scalar_lea.vmem [#allocation13], %s614
          %616 = dma.done %s612, 64
        $region72: #{tpu_custom_call.1} parent=59 // pred_fallthru
          _
      $region60: #{tpu_custom_call.1} parent=5 // pred_fallthru
        _
    $region6: #{tpu_custom_call.1} parent=1 // loop_footer
      %s27 = sadd.s32 1, %s23
    $region7: #{tpu_custom_call.1} parent=1 // loop_footer_branch
      %22 = sbr.rel target = $region3
    $region8: #{tpu_custom_call.1} parent=1 // loop_exit
      _
    %617 = vsyncpa [#allocation6], 1
    %s618 = scalar_lea.sflag [#allocation6], 1
    %619 = vsyncpa %s618, 1
    %620 = vsyncpa [#allocation9], 1
    %s621 = scalar_lea.sflag [#allocation9], 1
    %622 = vsyncpa %s621, 1
    %623 = vsyncpa [#allocation7], 1
    %s624 = scalar_lea.sflag [#allocation7], 1
    %625 = vsyncpa %s624, 1
    %626 = vsyncpa [#allocation12], 1
    %s627 = scalar_lea.sflag [#allocation12], 1
    %628 = vsyncpa %s627, 1

</llo_original>
